<compile_context>
chip_gen: v7x
topology: tpu7x:2x2x1
jax: 0.10.0
libtpu: 0.0.40
codegen_flags: <defaults>
</compile_context>

<pallas_src>
import functools

import jax
import jax.numpy as jnp
from jax import lax
from jax.experimental import pallas as pl
from jax.experimental.pallas import tpu as pltpu


def _round_up(n, m):
    return ((n + m - 1) // m) * m


def _default_acc_dtype(compute_dtype):
    """bf16 epilogue on chips with a bf16 VALU (v6e / v7x), f32 otherwise."""
    if compute_dtype != jnp.bfloat16:
        return jnp.float32
    try:
        kind = jax.devices()[0].device_kind.lower()
    except Exception:  # pragma: no cover - defensive
        kind = ""
    if ("v6" in kind) or ("v7" in kind) or ("7x" in kind):
        return jnp.bfloat16
    return jnp.float32  # v5e and older: no bf16 VPU -> keep f32 bias+ReLU


def mlp_kernel(x_ref, w_in_ref, b_in_ref, w_h1_ref, b_h1_ref,
               w_h2_ref, b_h2_ref, w_pr_ref, b_pr_ref, o_ref,
               *, n_layer, compute_dtype, acc_dtype, n_chunks):
    tile_b = x_ref.shape[0]
    rows = tile_b // n_chunks

    def layer(chunks, w, b):
        # Independent sub-chains: issue every chunk's matmul (MXU) before any
        # chunk's bias+ReLU (VPU) so the scheduler can overlap the two units.
        dots = [jnp.dot(c, w, preferred_element_type=acc_dtype) for c in chunks]
        return [jnp.maximum(d + b, 0).astype(compute_dtype) for d in dots]

    chunks = [x_ref[i * rows:(i + 1) * rows, :] for i in range(n_chunks)]

    # input_layer + relu
    chunks = layer(chunks, w_in_ref[...], b_in_ref[...])
    # hidden1 + relu
    chunks = layer(chunks, w_h1_ref[...], b_h1_ref[...])

    # hidden2 applied n_layer times with shared weights
    if n_layer > 0:
        w_h2 = w_h2_ref[...]                      # hoisted: one load, reused
        # Hoist the (1,N)->(rows,N) bias broadcast out of the unrolled loop
        # (JAX does not CSE broadcast_in_dim).
        b_h2 = jnp.broadcast_to(b_h2_ref[...], (rows, w_h2_ref.shape[1]))

        def body(_, cs):
            return tuple(layer(list(cs), w_h2, b_h2))

        chunks = list(lax.fori_loop(0, n_layer, body, tuple(chunks),
                                    unroll=True))

    # predict: f32 accumulate + f32 bias, no activation
    w_pr = w_pr_ref[...]
    b_pr = b_pr_ref[...]
    outs = [jnp.dot(c, w_pr, preferred_element_type=jnp.float32)
            for c in chunks]
    for i, d in enumerate(outs):
        o_ref[i * rows:(i + 1) * rows, :] = (d + b_pr).astype(o_ref.dtype)


def prepare_params(params, *, compute_dtype=jnp.bfloat16, acc_dtype=None):
    """One-time padding + casting of the weights/biases (off the forward path).

    params: (w_in, b_in, w_h1, b_h1, w_h2, b_h2, w_pr, b_pr),
            weights stored (in, out), biases (1, out), float32.
    """
    (w_in, b_in, w_h1, b_h1, w_h2, b_h2, w_pr, b_pr) = params
    if compute_dtype == jnp.float32:
        acc_dtype = jnp.float32
    elif acc_dtype is None:
        acc_dtype = _default_acc_dtype(compute_dtype)

    F, N1 = w_in.shape
    N2 = w_h1.shape[1]
    NO = w_pr.shape[1]
    # Lane-dense padding (feature / neuron / output dims -> multiples of 128).
    F_p, N1_p, N2_p, NO_p = (_round_up(d, 128) for d in (F, N1, N2, NO))

    def pad2(a, rows, cols, dtype):
        a = a.astype(dtype)
        r, c = a.shape
        if (r, c) == (rows, cols):
            return a
        return jnp.pad(a, ((0, rows - r), (0, cols - c)))

    weights = (
        pad2(w_in, F_p, N1_p, compute_dtype),
        pad2(b_in, 1, N1_p, acc_dtype),
        pad2(w_h1, N1_p, N2_p, compute_dtype),
        pad2(b_h1, 1, N2_p, acc_dtype),
        pad2(w_h2, N2_p, N2_p, compute_dtype),
        pad2(b_h2, 1, N2_p, acc_dtype),
        pad2(w_pr, N2_p, NO_p, compute_dtype),
        pad2(b_pr, 1, NO_p, jnp.float32),       # final bias stays f32
    )
    meta = dict(F=F, NO=NO, F_p=F_p, NO_p=NO_p,
                compute_dtype=compute_dtype, acc_dtype=acc_dtype)
    return weights, meta


def net_forward(x, prepared, n_layer):
    """Pallas forward pass. x: (B, n_feature) float32; prepared from prepare_params."""
    weights, meta = prepared
    F, NO = meta["F"], meta["NO"]
    F_p, NO_p = meta["F_p"], meta["NO_p"]
    compute_dtype = meta["compute_dtype"]
    acc_dtype = meta["acc_dtype"]

    B = x.shape[0]
    assert x.shape[1] == F

    # Batch tiling: one grid step for tiny batches (per-step pipeline overhead
    # dominates), otherwise an even number of tiles so v7x's 2 TensorCores get
    # balanced work on the "parallel" axis.  bf16 rows align to 16 (sublane
    # packing), f32 to 8.
    sub = 16 if compute_dtype == jnp.bfloat16 else 8
    B8 = _round_up(B, sub)
    if B8 < 256:
        n_tiles = 1
    else:
        n_tiles = max(2, pl.cdiv(B8, 256))
        if n_tiles % 2:
            n_tiles += 1
    tile_b = _round_up(pl.cdiv(B8, n_tiles), sub)
    B_p = tile_b * n_tiles

    # Intra-tile split into two independent sub-chains when the tile halves
    # stay sublane-aligned.
    n_chunks = 2 if (tile_b % (2 * sub) == 0) else 1

    x_p = x.astype(compute_dtype)
    if (B, F) != (B_p, F_p):
        x_p = jnp.pad(x_p, ((0, B_p - B), (0, F_p - F)))
    # Padded batch rows carry relu(bias) garbage through the layers; they never
    # mix with real rows and are sliced off below.

    def full(a):
        r, c = a.shape
        return pl.BlockSpec((r, c), lambda i: (0, 0))   # grid-invariant block

    operand_bytes = (x_p.dtype.itemsize * tile_b * F_p
                     + 4 * tile_b * NO_p
                     + sum(int(a.size) * a.dtype.itemsize for a in weights))
    # Never below the 32 MiB default; capped at v7x's 64 MiB physical VMEM.
    vmem_limit = int(min(64 * 2 ** 20, max(32 * 2 ** 20, 3 * operand_bytes)))

    kernel = functools.partial(mlp_kernel, n_layer=n_layer,
                               compute_dtype=compute_dtype,
                               acc_dtype=acc_dtype, n_chunks=n_chunks)

    out_p = pl.pallas_call(
        kernel,
        out_shape=jax.ShapeDtypeStruct((B_p, NO_p), jnp.float32),
        grid_spec=pltpu.PrefetchScalarGridSpec(
            num_scalar_prefetch=0,
            grid=(n_tiles,),
            in_specs=[pl.BlockSpec((tile_b, F_p), lambda i: (i, 0))]
                     + [full(a) for a in weights],
            out_specs=pl.BlockSpec((tile_b, NO_p), lambda i: (i, 0)),
        ),
        compiler_params=pltpu.CompilerParams(
            dimension_semantics=("parallel",),
            vmem_limit_bytes=vmem_limit),
    )(x_p, *weights)

    return out_p[:B, :NO]


def init_params(key, n_feature, n_output, n_neuron1, n_neuron2):
    """Deterministic init mimicking nn.Linear's U(-1/sqrt(fan_in), 1/sqrt(fan_in)).
    Weights stored as (in, out)."""
    ks = jax.random.split(key, 8)

    def lin(kw, kb, fan_in, fan_out):
        bound = 1.0 / jnp.sqrt(fan_in)
        w = jax.random.uniform(kw, (fan_in, fan_out), jnp.float32, -bound, bound)
        b = jax.random.uniform(kb, (1, fan_out), jnp.float32, -bound, bound)
        return w, b

    w_in, b_in = lin(ks[0], ks[1], n_feature, n_neuron1)
    w_h1, b_h1 = lin(ks[2], ks[3], n_neuron1, n_neuron2)
    w_h2, b_h2 = lin(ks[4], ks[5], n_neuron2, n_neuron2)
    w_pr, b_pr = lin(ks[6], ks[7], n_neuron2, n_output)
    return (w_in, b_in, w_h1, b_h1, w_h2, b_h2, w_pr, b_pr)


def net_forward_ref(x, params, n_layer):
    """Pure-JAX f32 reference for correctness check."""
    (w_in, b_in, w_h1, b_h1, w_h2, b_h2, w_pr, b_pr) = params
    out = jnp.maximum(x @ w_in + b_in, 0.0)
    out = jnp.maximum(out @ w_h1 + b_h1, 0.0)
    for _ in range(n_layer):
        out = jnp.maximum(out @ w_h2 + b_h2, 0.0)
    return out @ w_pr + b_pr


if __name__ == "__main__":
    # Small shapes consistent with the module's forward pass.
    n_feature, n_output = 8, 4
    n_neuron1, n_neuron2 = 32, 32
    n_layer = 3
    batch = 16

    key = jax.random.PRNGKey(0)
    kx, kp = jax.random.split(key)
    x = jax.random.normal(kx, (batch, n_feature), jnp.float32)
    params = init_params(kp, n_feature, n_output, n_neuron1, n_neuron2)

    ref = net_forward_ref(x, params, n_layer)

    # 1) exact-semantics path (f32 operands), single-grid-step small batch
    prep_f32 = prepare_params(params, compute_dtype=jnp.float32)
    out_f32 = jax.block_until_ready(net_forward(x, prep_f32, n_layer))
    assert out_f32.shape == (batch, n_output)
    assert jnp.allclose(out_f32, ref, atol=1e-5, rtol=1e-5)

    # 2) production bf16 MXU path (weights prepared once, off the hot path)
    prep_bf16 = prepare_params(params, compute_dtype=jnp.bfloat16)
    out_bf16 = jax.block_until_ready(net_forward(x, prep_bf16, n_layer))
    assert out_bf16.shape == (batch, n_output)
    assert jnp.allclose(out_bf16, ref, atol=1e-1, rtol=1e-1)

    # 3) larger batch exercises the even-tile grid path (640 -> 4 tiles of 160)
    big_b = 640
    xb = jax.random.normal(kx, (big_b, n_feature), jnp.float32)
    refb = net_forward_ref(xb, params, n_layer)
    outb = jax.block_until_ready(net_forward(xb, prep_f32, n_layer))
    assert outb.shape == (big_b, n_output)
    assert jnp.allclose(outb, refb, atol=1e-5, rtol=1e-5)

    print("KERNEL_OK")
</pallas_src>

<mosaic_0001>
module attributes {stable_mosaic.version = 11 : i64} {
  func.func @mlp_kernel(%arg0: i32, %arg1: memref<16x128xf32, #tpu.memory_space<vmem>>, %arg2: memref<128x128xf32, #tpu.memory_space<vmem>>, %arg3: memref<1x128xf32, #tpu.memory_space<vmem>>, %arg4: memref<128x128xf32, #tpu.memory_space<vmem>>, %arg5: memref<1x128xf32, #tpu.memory_space<vmem>>, %arg6: memref<128x128xf32, #tpu.memory_space<vmem>>, %arg7: memref<1x128xf32, #tpu.memory_space<vmem>>, %arg8: memref<128x128xf32, #tpu.memory_space<vmem>>, %arg9: memref<1x128xf32, #tpu.memory_space<vmem>>, %arg10: memref<16x128xf32, #tpu.memory_space<vmem>>) attributes {dimension_semantics = [#tpu.dimension_semantics<parallel>], iteration_bounds = array<i64: 1>, scalar_prefetch = 0 : i64, scratch_operands = 0 : i64, tpu.core_type = #tpu.core_type<tc>, window_params = [{transform_indices = @transform_0, window_bounds = array<i64: 16, 128>}, {pipeline_mode = #tpu.pipeline_mode<synchronous>, transform_indices = @transform_1, window_bounds = array<i64: 128, 128>}, {pipeline_mode = #tpu.pipeline_mode<synchronous>, transform_indices = @transform_2, window_bounds = array<i64: 1, 128>}, {pipeline_mode = #tpu.pipeline_mode<synchronous>, transform_indices = @transform_3, window_bounds = array<i64: 128, 128>}, {pipeline_mode = #tpu.pipeline_mode<synchronous>, transform_indices = @transform_4, window_bounds = array<i64: 1, 128>}, {pipeline_mode = #tpu.pipeline_mode<synchronous>, transform_indices = @transform_5, window_bounds = array<i64: 128, 128>}, {pipeline_mode = #tpu.pipeline_mode<synchronous>, transform_indices = @transform_6, window_bounds = array<i64: 1, 128>}, {pipeline_mode = #tpu.pipeline_mode<synchronous>, transform_indices = @transform_7, window_bounds = array<i64: 128, 128>}, {pipeline_mode = #tpu.pipeline_mode<synchronous>, transform_indices = @transform_8, window_bounds = array<i64: 1, 128>}, {transform_indices = @transform_9, window_bounds = array<i64: 16, 128>}]} {
    %c0 = arith.constant 0 : index
    %c0_0 = arith.constant 0 : index
    %0 = vector.load %arg1[%c0, %c0_0] : memref<16x128xf32, #tpu.memory_space<vmem>>, vector<8x128xf32>
    %c8 = arith.constant 8 : index
    %c0_1 = arith.constant 0 : index
    %1 = vector.load %arg1[%c8, %c0_1] : memref<16x128xf32, #tpu.memory_space<vmem>>, vector<8x128xf32>
    %c0_2 = arith.constant 0 : index
    %c0_3 = arith.constant 0 : index
    %2 = vector.load %arg2[%c0_2, %c0_3] : memref<128x128xf32, #tpu.memory_space<vmem>>, vector<128x128xf32>
    %c0_4 = arith.constant 0 : index
    %c0_5 = arith.constant 0 : index
    %3 = vector.load %arg3[%c0_4, %c0_5] : memref<1x128xf32, #tpu.memory_space<vmem>>, vector<1x128xf32>
    %cst = arith.constant dense<0.000000e+00> : vector<8x128xf32>
    %4 = tpu.matmul %0, %2, %cst {dimension_numbers = #tpu.dot_dimension_numbers<[1], [0], [0], [1], [0, 0, 1, 1], [], []>} : vector<8x128xf32>, vector<128x128xf32>, vector<8x128xf32> -> vector<8x128xf32>
    %cst_6 = arith.constant dense<0.000000e+00> : vector<8x128xf32>
    %5 = tpu.matmul %1, %2, %cst_6 {dimension_numbers = #tpu.dot_dimension_numbers<[1], [0], [0], [1], [0, 0, 1, 1], [], []>} : vector<8x128xf32>, vector<128x128xf32>, vector<8x128xf32> -> vector<8x128xf32>
    %6 = vector.broadcast %3 : vector<1x128xf32> to vector<8x128xf32>
    %7 = arith.addf %4, %6 : vector<8x128xf32>
    %cst_7 = arith.constant 0.000000e+00 : f32
    %8 = vector.broadcast %cst_7 : f32 to vector<8x128xf32>
    %9 = arith.maximumf %7, %8 : vector<8x128xf32>
    %10 = vector.broadcast %3 : vector<1x128xf32> to vector<8x128xf32>
    %11 = arith.addf %5, %10 : vector<8x128xf32>
    %cst_8 = arith.constant 0.000000e+00 : f32
    %12 = vector.broadcast %cst_8 : f32 to vector<8x128xf32>
    %13 = arith.maximumf %11, %12 : vector<8x128xf32>
    %c0_9 = arith.constant 0 : index
    %c0_10 = arith.constant 0 : index
    %14 = vector.load %arg4[%c0_9, %c0_10] : memref<128x128xf32, #tpu.memory_space<vmem>>, vector<128x128xf32>
    %c0_11 = arith.constant 0 : index
    %c0_12 = arith.constant 0 : index
    %15 = vector.load %arg5[%c0_11, %c0_12] : memref<1x128xf32, #tpu.memory_space<vmem>>, vector<1x128xf32>
    %cst_13 = arith.constant dense<0.000000e+00> : vector<8x128xf32>
    %16 = tpu.matmul %9, %14, %cst_13 {dimension_numbers = #tpu.dot_dimension_numbers<[1], [0], [0], [1], [0, 0, 1, 1], [], []>} : vector<8x128xf32>, vector<128x128xf32>, vector<8x128xf32> -> vector<8x128xf32>
    %cst_14 = arith.constant dense<0.000000e+00> : vector<8x128xf32>
    %17 = tpu.matmul %13, %14, %cst_14 {dimension_numbers = #tpu.dot_dimension_numbers<[1], [0], [0], [1], [0, 0, 1, 1], [], []>} : vector<8x128xf32>, vector<128x128xf32>, vector<8x128xf32> -> vector<8x128xf32>
    %18 = vector.broadcast %15 : vector<1x128xf32> to vector<8x128xf32>
    %19 = arith.addf %16, %18 : vector<8x128xf32>
    %cst_15 = arith.constant 0.000000e+00 : f32
    %20 = vector.broadcast %cst_15 : f32 to vector<8x128xf32>
    %21 = arith.maximumf %19, %20 : vector<8x128xf32>
    %22 = vector.broadcast %15 : vector<1x128xf32> to vector<8x128xf32>
    %23 = arith.addf %17, %22 : vector<8x128xf32>
    %cst_16 = arith.constant 0.000000e+00 : f32
    %24 = vector.broadcast %cst_16 : f32 to vector<8x128xf32>
    %25 = arith.maximumf %23, %24 : vector<8x128xf32>
    %c0_17 = arith.constant 0 : index
    %c0_18 = arith.constant 0 : index
    %26 = vector.load %arg6[%c0_17, %c0_18] : memref<128x128xf32, #tpu.memory_space<vmem>>, vector<128x128xf32>
    %c0_19 = arith.constant 0 : index
    %c0_20 = arith.constant 0 : index
    %27 = vector.load %arg7[%c0_19, %c0_20] : memref<1x128xf32, #tpu.memory_space<vmem>>, vector<1x128xf32>
    %28 = vector.shape_cast %27 : vector<1x128xf32> to vector<1x128xf32>
    %29 = vector.broadcast %28 : vector<1x128xf32> to vector<8x128xf32>
    %c0_i32 = arith.constant 0 : i32
    %cst_21 = arith.constant dense<0.000000e+00> : vector<8x128xf32>
    %30 = tpu.matmul %21, %26, %cst_21 {dimension_numbers = #tpu.dot_dimension_numbers<[1], [0], [0], [1], [0, 0, 1, 1], [], []>} : vector<8x128xf32>, vector<128x128xf32>, vector<8x128xf32> -> vector<8x128xf32>
    %cst_22 = arith.constant dense<0.000000e+00> : vector<8x128xf32>
    %31 = tpu.matmul %25, %26, %cst_22 {dimension_numbers = #tpu.dot_dimension_numbers<[1], [0], [0], [1], [0, 0, 1, 1], [], []>} : vector<8x128xf32>, vector<128x128xf32>, vector<8x128xf32> -> vector<8x128xf32>
    %32 = arith.addf %30, %29 : vector<8x128xf32>
    %cst_23 = arith.constant 0.000000e+00 : f32
    %33 = vector.broadcast %cst_23 : f32 to vector<8x128xf32>
    %34 = arith.maximumf %32, %33 : vector<8x128xf32>
    %35 = arith.addf %31, %29 : vector<8x128xf32>
    %cst_24 = arith.constant 0.000000e+00 : f32
    %36 = vector.broadcast %cst_24 : f32 to vector<8x128xf32>
    %37 = arith.maximumf %35, %36 : vector<8x128xf32>
    %c1_i32 = arith.constant 1 : i32
    %cst_25 = arith.constant dense<0.000000e+00> : vector<8x128xf32>
    %38 = tpu.matmul %34, %26, %cst_25 {dimension_numbers = #tpu.dot_dimension_numbers<[1], [0], [0], [1], [0, 0, 1, 1], [], []>} : vector<8x128xf32>, vector<128x128xf32>, vector<8x128xf32> -> vector<8x128xf32>
    %cst_26 = arith.constant dense<0.000000e+00> : vector<8x128xf32>
    %39 = tpu.matmul %37, %26, %cst_26 {dimension_numbers = #tpu.dot_dimension_numbers<[1], [0], [0], [1], [0, 0, 1, 1], [], []>} : vector<8x128xf32>, vector<128x128xf32>, vector<8x128xf32> -> vector<8x128xf32>
    %40 = arith.addf %38, %29 : vector<8x128xf32>
    %cst_27 = arith.constant 0.000000e+00 : f32
    %41 = vector.broadcast %cst_27 : f32 to vector<8x128xf32>
    %42 = arith.maximumf %40, %41 : vector<8x128xf32>
    %43 = arith.addf %39, %29 : vector<8x128xf32>
    %cst_28 = arith.constant 0.000000e+00 : f32
    %44 = vector.broadcast %cst_28 : f32 to vector<8x128xf32>
    %45 = arith.maximumf %43, %44 : vector<8x128xf32>
    %c2_i32 = arith.constant 2 : i32
    %cst_29 = arith.constant dense<0.000000e+00> : vector<8x128xf32>
    %46 = tpu.matmul %42, %26, %cst_29 {dimension_numbers = #tpu.dot_dimension_numbers<[1], [0], [0], [1], [0, 0, 1, 1], [], []>} : vector<8x128xf32>, vector<128x128xf32>, vector<8x128xf32> -> vector<8x128xf32>
    %cst_30 = arith.constant dense<0.000000e+00> : vector<8x128xf32>
    %47 = tpu.matmul %45, %26, %cst_30 {dimension_numbers = #tpu.dot_dimension_numbers<[1], [0], [0], [1], [0, 0, 1, 1], [], []>} : vector<8x128xf32>, vector<128x128xf32>, vector<8x128xf32> -> vector<8x128xf32>
    %48 = arith.addf %46, %29 : vector<8x128xf32>
    %cst_31 = arith.constant 0.000000e+00 : f32
    %49 = vector.broadcast %cst_31 : f32 to vector<8x128xf32>
    %50 = arith.maximumf %48, %49 : vector<8x128xf32>
    %51 = arith.addf %47, %29 : vector<8x128xf32>
    %cst_32 = arith.constant 0.000000e+00 : f32
    %52 = vector.broadcast %cst_32 : f32 to vector<8x128xf32>
    %53 = arith.maximumf %51, %52 : vector<8x128xf32>
    %c0_33 = arith.constant 0 : index
    %c0_34 = arith.constant 0 : index
    %54 = vector.load %arg8[%c0_33, %c0_34] : memref<128x128xf32, #tpu.memory_space<vmem>>, vector<128x128xf32>
    %c0_35 = arith.constant 0 : index
    %c0_36 = arith.constant 0 : index
    %55 = vector.load %arg9[%c0_35, %c0_36] : memref<1x128xf32, #tpu.memory_space<vmem>>, vector<1x128xf32>
    %cst_37 = arith.constant dense<0.000000e+00> : vector<8x128xf32>
    %56 = tpu.matmul %50, %54, %cst_37 {dimension_numbers = #tpu.dot_dimension_numbers<[1], [0], [0], [1], [0, 0, 1, 1], [], []>} : vector<8x128xf32>, vector<128x128xf32>, vector<8x128xf32> -> vector<8x128xf32>
    %cst_38 = arith.constant dense<0.000000e+00> : vector<8x128xf32>
    %57 = tpu.matmul %53, %54, %cst_38 {dimension_numbers = #tpu.dot_dimension_numbers<[1], [0], [0], [1], [0, 0, 1, 1], [], []>} : vector<8x128xf32>, vector<128x128xf32>, vector<8x128xf32> -> vector<8x128xf32>
    %58 = vector.broadcast %55 : vector<1x128xf32> to vector<8x128xf32>
    %59 = arith.addf %56, %58 : vector<8x128xf32>
    %c0_39 = arith.constant 0 : index
    %c0_40 = arith.constant 0 : index
    %60 = vector.load %arg10[%c0_39, %c0_40] : memref<16x128xf32, #tpu.memory_space<vmem>>, vector<8x128xf32>
    tpu.vector_store %arg10[%c0_39, %c0_40], %59 {strides = array<i32>} : memref<16x128xf32, #tpu.memory_space<vmem>>, vector<8x128xf32>,
    %61 = vector.broadcast %55 : vector<1x128xf32> to vector<8x128xf32>
    %62 = arith.addf %57, %61 : vector<8x128xf32>
    %c8_41 = arith.constant 8 : index
    %c0_42 = arith.constant 0 : index
    %63 = vector.load %arg10[%c8_41, %c0_42] : memref<16x128xf32, #tpu.memory_space<vmem>>, vector<8x128xf32>
    tpu.vector_store %arg10[%c8_41, %c0_42], %62 {strides = array<i32>} : memref<16x128xf32, #tpu.memory_space<vmem>>, vector<8x128xf32>,
    return
  }
  func.func @transform_0(%arg0: i32) -> (i32, i32) {
    %c0_i32 = arith.constant 0 : i32
    %c0_i32_0 = arith.constant 0 : i32
    return %arg0, %c0_i32 : i32, i32
  }
  func.func @transform_1(%arg0: i32) -> (i32, i32) {
    %c0_i32 = arith.constant 0 : i32
    %c0_i32_0 = arith.constant 0 : i32
    %c0_i32_1 = arith.constant 0 : i32
    return %c0_i32, %c0_i32_0 : i32, i32
  }
  func.func @transform_2(%arg0: i32) -> (i32, i32) {
    %c0_i32 = arith.constant 0 : i32
    %c0_i32_0 = arith.constant 0 : i32
    %c0_i32_1 = arith.constant 0 : i32
    return %c0_i32, %c0_i32_0 : i32, i32
  }
  func.func @transform_3(%arg0: i32) -> (i32, i32) {
    %c0_i32 = arith.constant 0 : i32
    %c0_i32_0 = arith.constant 0 : i32
    %c0_i32_1 = arith.constant 0 : i32
    return %c0_i32, %c0_i32_0 : i32, i32
  }
  func.func @transform_4(%arg0: i32) -> (i32, i32) {
    %c0_i32 = arith.constant 0 : i32
    %c0_i32_0 = arith.constant 0 : i32
    %c0_i32_1 = arith.constant 0 : i32
    return %c0_i32, %c0_i32_0 : i32, i32
  }
  func.func @transform_5(%arg0: i32) -> (i32, i32) {
    %c0_i32 = arith.constant 0 : i32
    %c0_i32_0 = arith.constant 0 : i32
    %c0_i32_1 = arith.constant 0 : i32
    return %c0_i32, %c0_i32_0 : i32, i32
  }
  func.func @transform_6(%arg0: i32) -> (i32, i32) {
    %c0_i32 = arith.constant 0 : i32
    %c0_i32_0 = arith.constant 0 : i32
    %c0_i32_1 = arith.constant 0 : i32
    return %c0_i32, %c0_i32_0 : i32, i32
  }
  func.func @transform_7(%arg0: i32) -> (i32, i32) {
    %c0_i32 = arith.constant 0 : i32
    %c0_i32_0 = arith.constant 0 : i32
    %c0_i32_1 = arith.constant 0 : i32
    return %c0_i32, %c0_i32_0 : i32, i32
  }
  func.func @transform_8(%arg0: i32) -> (i32, i32) {
    %c0_i32 = arith.constant 0 : i32
    %c0_i32_0 = arith.constant 0 : i32
    %c0_i32_1 = arith.constant 0 : i32
    return %c0_i32, %c0_i32_0 : i32, i32
  }
  func.func @transform_9(%arg0: i32) -> (i32, i32) {
    %c0_i32 = arith.constant 0 : i32
    %c0_i32_0 = arith.constant 0 : i32
    return %arg0, %c0_i32 : i32, i32
  }
}

</mosaic_0001>

<llo_original>
// kernel: tpu_custom_call.1
$region0: #{tpu_custom_call.1}
  #allocation0 [shape = 'u32[]', space=smem, size = 0x4, offset = 0x4, fixed_abs, tag = 'smem constant byte address 0x4 - core index']
  #allocation1 [shape = 'u32[144,128]{1,0:T(1,128)}', space=vmem, size = 0x12000, scoped, tag = 'internal scratch']
  %s0 = inlined_call_operand.hbm [shape: f32[16,128], index: 0, kind: input, shape index: {}]
  %s1 = inlined_call_operand.hbm [shape: f32[128,128], index: 1, kind: input, shape index: {}]
  %s2 = inlined_call_operand.vmem [shape: f32[1,128], index: 2, kind: input, shape index: {}]
  %s3 = inlined_call_operand.hbm [shape: f32[128,128], index: 3, kind: input, shape index: {}]
  %s4 = inlined_call_operand.vmem [shape: f32[1,128], index: 4, kind: input, shape index: {}]
  %s5 = inlined_call_operand.hbm [shape: f32[128,128], index: 5, kind: input, shape index: {}]
  %s6 = inlined_call_operand.vmem [shape: f32[1,128], index: 6, kind: input, shape index: {}]
  %s7 = inlined_call_operand.hbm [shape: f32[128,128], index: 7, kind: input, shape index: {}]
  %s8 = inlined_call_operand.vmem [shape: f32[1,128], index: 8, kind: input, shape index: {}]
  %s9 = inlined_call_operand.hbm [shape: f32[16,128], index: 9, kind: output, shape index: {}]
  %s10 = sld [smem:[#allocation0]]
  $region66: #{tpu_custom_call.1} parent=0
    _
  %s12 = ssub.s32 1, %s10
  %s13 = scalar_select 0, %s12, %s10
  $region1: #{tpu_custom_call.1} parent=0
    #allocation2 [shape = 'u8[8192]{0}', space=vmem, size = 0x2000, scoped, tag = 'input window, operand 0, single buffered']
    #allocation3 [shape = 's32[1]{0}', space=sflag, size = 0x4, scoped, tag = 'scoped memory for tpu_custom_call.1']
    #allocation4 [shape = 's32[1]{0}', space=sflag, size = 0x4, scoped, tag = 'scoped memory for tpu_custom_call.1']
    #allocation5 [shape = 'u8[65536]{0}', space=vmem, size = 0x10000, scoped, tag = 'input window, operand 1, single buffered']
    #allocation6 [shape = 's32[1]{0}', space=sflag, size = 0x4, scoped, tag = 'scoped memory for tpu_custom_call.1']
    #allocation7 [shape = 'u8[65536]{0}', space=vmem, size = 0x10000, scoped, tag = 'input window, operand 3, single buffered']
    #allocation8 [shape = 'u8[65536]{0}', space=vmem, size = 0x10000, scoped, tag = 'input window, operand 5, single buffered']
    #allocation9 [shape = 's32[1]{0}', space=sflag, size = 0x4, scoped, tag = 'scoped memory for tpu_custom_call.1']
    #allocation10 [shape = 'u8[65536]{0}', space=vmem, size = 0x10000, scoped, tag = 'input window, operand 7, single buffered']
    #allocation11 [shape = 'u8[8192]{0}', space=vmem, size = 0x2000, scoped, tag = 'output window, operand 0, single buffered']
    %14 = vsyncpa [#allocation3], 0
    %15 = vsyncpa [#allocation6], 0
    %16 = vsyncpa [#allocation9], 0
    %17 = vsyncpa [#allocation4], 0
    // Predicated region
    $region2: #{tpu_custom_call.1} parent=1 // pred_check
      _
    $region3: #{tpu_custom_call.1} parent=1 // pred_check_branch
      %19 = sbr.rel (0) target = $region5
    $region4: #{tpu_custom_call.1} parent=1 // pred_region
      %s21 = ssub.s32 256, 256
      %22 = vsyncadd [#allocation3], %s21
      %s23 = sshll.u32 [#allocation2], 4
      %s24 = int_to_ptr.vmem [resolvable:$true] %s23
      %29 = dma.hbm_to_vmem [thread:$0]  %s0, 256, %s24, [#allocation3], 128, 128, 8
    $region5: #{tpu_custom_call.1} parent=1 // pred_fallthru
      _
    // Predicated region
    $region6: #{tpu_custom_call.1} parent=1 // pred_check
      _
    $region7: #{tpu_custom_call.1} parent=1 // pred_check_branch
      %31 = sbr.rel (0) target = $region9
    $region8: #{tpu_custom_call.1} parent=1 // pred_region
      %s33 = ssub.s32 2048, 2048
      %34 = vsyncadd [#allocation6], %s33
      %s35 = sshll.u32 [#allocation5], 4
      %s36 = int_to_ptr.vmem [resolvable:$true] %s35
      %41 = dma.hbm_to_vmem [thread:$0]  %s1, 2048, %s36, [#allocation6], 128, 128, 8
    $region9: #{tpu_custom_call.1} parent=1 // pred_fallthru
      _
    // Predicated region
    $region10: #{tpu_custom_call.1} parent=1 // pred_check
      _
    $region11: #{tpu_custom_call.1} parent=1 // pred_check_branch
      %43 = sbr.rel (0) target = $region13
    $region12: #{tpu_custom_call.1} parent=1 // pred_region
      _
    $region13: #{tpu_custom_call.1} parent=1 // pred_fallthru
      _
    // Predicated region
    $region14: #{tpu_custom_call.1} parent=1 // pred_check
      _
    $region15: #{tpu_custom_call.1} parent=1 // pred_check_branch
      %45 = sbr.rel (0) target = $region17
    $region16: #{tpu_custom_call.1} parent=1 // pred_region
      %s47 = ssub.s32 2048, 2048
      %48 = vsyncadd [#allocation6], %s47
      %s49 = sshll.u32 [#allocation7], 4
      %s50 = int_to_ptr.vmem [resolvable:$true] %s49
      %55 = dma.hbm_to_vmem [thread:$0]  %s3, 2048, %s50, [#allocation6], 128, 128, 8
    $region17: #{tpu_custom_call.1} parent=1 // pred_fallthru
      _
    // Predicated region
    $region18: #{tpu_custom_call.1} parent=1 // pred_check
      _
    $region19: #{tpu_custom_call.1} parent=1 // pred_check_branch
      %57 = sbr.rel (0) target = $region21
    $region20: #{tpu_custom_call.1} parent=1 // pred_region
      _
    $region21: #{tpu_custom_call.1} parent=1 // pred_fallthru
      _
    // Predicated region
    $region22: #{tpu_custom_call.1} parent=1 // pred_check
      _
    $region23: #{tpu_custom_call.1} parent=1 // pred_check_branch
      %59 = sbr.rel (0) target = $region25
    $region24: #{tpu_custom_call.1} parent=1 // pred_region
      %s61 = ssub.s32 2048, 2048
      %62 = vsyncadd [#allocation9], %s61
      %s63 = sshll.u32 [#allocation8], 4
      %s64 = int_to_ptr.vmem [resolvable:$true] %s63
      %69 = dma.hbm_to_vmem [thread:$0]  %s5, 2048, %s64, [#allocation9], 128, 128, 8
    $region25: #{tpu_custom_call.1} parent=1 // pred_fallthru
      _
    // Predicated region
    $region26: #{tpu_custom_call.1} parent=1 // pred_check
      _
    $region27: #{tpu_custom_call.1} parent=1 // pred_check_branch
      %71 = sbr.rel (0) target = $region29
    $region28: #{tpu_custom_call.1} parent=1 // pred_region
      _
    $region29: #{tpu_custom_call.1} parent=1 // pred_fallthru
      _
    // Predicated region
    $region30: #{tpu_custom_call.1} parent=1 // pred_check
      _
    $region31: #{tpu_custom_call.1} parent=1 // pred_check_branch
      %73 = sbr.rel (0) target = $region33
    $region32: #{tpu_custom_call.1} parent=1 // pred_region
      %s75 = ssub.s32 2048, 2048
      %76 = vsyncadd [#allocation9], %s75
      %s77 = sshll.u32 [#allocation10], 4
      %s78 = int_to_ptr.vmem [resolvable:$true] %s77
      %83 = dma.hbm_to_vmem [thread:$0]  %s7, 2048, %s78, [#allocation9], 128, 128, 8
    $region33: #{tpu_custom_call.1} parent=1 // pred_fallthru
      _
    // Predicated region
    $region34: #{tpu_custom_call.1} parent=1 // pred_check
      _
    $region35: #{tpu_custom_call.1} parent=1 // pred_check_branch
      %85 = sbr.rel (0) target = $region37
    $region36: #{tpu_custom_call.1} parent=1 // pred_region
      _
    $region37: #{tpu_custom_call.1} parent=1 // pred_fallthru
      _
    // Predicated region
    $region38: #{tpu_custom_call.1} parent=1 // pred_check
      _
    $region39: #{tpu_custom_call.1} parent=1 // pred_check_branch
      %87 = sbr.rel (0) target = $region41
    $region40: #{tpu_custom_call.1} parent=1 // pred_region
      %88 = dma.done [#allocation3], 256
    $region41: #{tpu_custom_call.1} parent=1 // pred_fallthru
      _
    // Predicated region
    $region42: #{tpu_custom_call.1} parent=1 // pred_check
      _
    $region43: #{tpu_custom_call.1} parent=1 // pred_check_branch
      %90 = sbr.rel (0) target = $region45
    $region44: #{tpu_custom_call.1} parent=1 // pred_region
      %91 = dma.done [#allocation6], 2048
    $region45: #{tpu_custom_call.1} parent=1 // pred_fallthru
      _
    // Predicated region
    $region46: #{tpu_custom_call.1} parent=1 // pred_check
      _
    $region47: #{tpu_custom_call.1} parent=1 // pred_check_branch
      %93 = sbr.rel (0) target = $region49
    $region48: #{tpu_custom_call.1} parent=1 // pred_region
      %94 = dma.done [#allocation6], 2048
    $region49: #{tpu_custom_call.1} parent=1 // pred_fallthru
      _
    // Predicated region
    $region50: #{tpu_custom_call.1} parent=1 // pred_check
      _
    $region51: #{tpu_custom_call.1} parent=1 // pred_check_branch
      %96 = sbr.rel (0) target = $region53
    $region52: #{tpu_custom_call.1} parent=1 // pred_region
      %97 = dma.done [#allocation9], 2048
    $region53: #{tpu_custom_call.1} parent=1 // pred_fallthru
      _
    // Predicated region
    $region54: #{tpu_custom_call.1} parent=1 // pred_check
      _
    $region55: #{tpu_custom_call.1} parent=1 // pred_check_branch
      %99 = sbr.rel (0) target = $region57
    $region56: #{tpu_custom_call.1} parent=1 // pred_region
      %100 = dma.done [#allocation9], 2048
    $region57: #{tpu_custom_call.1} parent=1 // pred_fallthru
      _
    %v101 = vld [vmem:[#allocation2] sm:$0xff]
    %v102 = vld [vmem:[#allocation2 + $0x8] sm:$0xff]
    %v103 = vld [vmem:[#allocation5] sm:$0xff]
    %v104 = vld [vmem:[#allocation5 + $0x8] sm:$0xff]
    %v105 = vld [vmem:[#allocation5 + $0x10] sm:$0xff]
    %v106 = vld [vmem:[#allocation5 + $0x18] sm:$0xff]
    %v107 = vld [vmem:[#allocation5 + $0x20] sm:$0xff]
    %v108 = vld [vmem:[#allocation5 + $0x28] sm:$0xff]
    %v109 = vld [vmem:[#allocation5 + $0x30] sm:$0xff]
    %v110 = vld [vmem:[#allocation5 + $0x38] sm:$0xff]
    %v111 = vld [vmem:[#allocation5 + $0x40] sm:$0xff]
    %v112 = vld [vmem:[#allocation5 + $0x48] sm:$0xff]
    %v113 = vld [vmem:[#allocation5 + $0x50] sm:$0xff]
    %v114 = vld [vmem:[#allocation5 + $0x58] sm:$0xff]
    %v115 = vld [vmem:[#allocation5 + $0x60] sm:$0xff]
    %v116 = vld [vmem:[#allocation5 + $0x68] sm:$0xff]
    %v117 = vld [vmem:[#allocation5 + $0x70] sm:$0xff]
    %v118 = vld [vmem:[#allocation5 + $0x78] sm:$0xff]
    %v119 = vld [vmem:[%s2] sm:$0x1]
    %v121 = vlaneseq
    %v122 = vshrl.u32 %v121, 7
    %v123 = vsub.s32 0, %v122
    %v124 = vrot.slane %v119, %v123
    %126 = vmatprep.subr.mxu0 0.0
    %127 = vmatpush1.msra.mxu0 %v103
    %128 = vmatprep.subr.mxu0 0.0
    %129 = vmatpush1.msra.mxu0 %v104
    %130 = vmatprep.subr.mxu0 0.0
    %131 = vmatpush1.msra.mxu0 %v105
    %132 = vmatprep.subr.mxu0 0.0
    %133 = vmatpush1.msra.mxu0 %v106
    %134 = vmatprep.subr.mxu0 0.0
    %135 = vmatpush1.msra.mxu0 %v107
    %136 = vmatprep.subr.mxu0 0.0
    %137 = vmatpush1.msra.mxu0 %v108
    %138 = vmatprep.subr.mxu0 0.0
    %139 = vmatpush1.msra.mxu0 %v109
    %140 = vmatprep.subr.mxu0 0.0
    %141 = vmatpush1.msra.mxu0 %v110
    %142 = vmatprep.subr.mxu0 0.0
    %143 = vmatpush1.msra.mxu0 %v111
    %144 = vmatprep.subr.mxu0 0.0
    %145 = vmatpush1.msra.mxu0 %v112
    %146 = vmatprep.subr.mxu0 0.0
    %147 = vmatpush1.msra.mxu0 %v113
    %148 = vmatprep.subr.mxu0 0.0
    %149 = vmatpush1.msra.mxu0 %v114
    %150 = vmatprep.subr.mxu0 0.0
    %151 = vmatpush1.msra.mxu0 %v115
    %152 = vmatprep.subr.mxu0 0.0
    %153 = vmatpush1.msra.mxu0 %v116
    %154 = vmatprep.subr.mxu0 0.0
    %155 = vmatpush1.msra.mxu0 %v117
    %156 = vmatprep.subr.mxu0 0.0
    %157 = vmatpush1.msra.mxu0 %v118
    %158 = vmatprep.subr.mxu0 0.0
    %159 = vmatpush1.msra.mxu0 0.0
    %160 = vmatprep.subr.mxu0 0.0
    %161 = vmatpush1.msra.mxu0 0.0
    %162 = vmatprep.subr.mxu0 0.0
    %163 = vmatpush1.msra.mxu0 0.0
    %164 = vmatprep.subr.mxu0 0.0
    %165 = vmatpush1.msra.mxu0 0.0
    %166 = vmatprep.subr.mxu0 0.0
    %167 = vmatpush1.msra.mxu0 0.0
    %168 = vmatprep.subr.mxu0 0.0
    %169 = vmatpush1.msra.mxu0 0.0
    %170 = vmatprep.subr.mxu0 0.0
    %171 = vmatpush1.msra.mxu0 0.0
    %172 = vmatprep.subr.mxu0 0.0
    %173 = vmatpush1.msra.mxu0 0.0
    %174 = vmatprep.subr.mxu0 0.0
    %175 = vmatpush1.msra.mxu0 0.0
    %176 = vmatprep.subr.mxu0 0.0
    %177 = vmatpush1.msra.mxu0 0.0
    %178 = vmatprep.subr.mxu0 0.0
    %179 = vmatpush1.msra.mxu0 0.0
    %180 = vmatprep.subr.mxu0 0.0
    %181 = vmatpush1.msra.mxu0 0.0
    %182 = vmatprep.subr.mxu0 0.0
    %183 = vmatpush1.msra.mxu0 0.0
    %184 = vmatprep.subr.mxu0 0.0
    %185 = vmatpush1.msra.mxu0 0.0
    %186 = vmatprep.subr.mxu0 0.0
    %187 = vmatpush1.msra.mxu0 0.0
    %188 = vmatprep.subr.mxu0 0.0
    %189 = vmatpush1.msra.mxu0 0.0
    %190 = vmatprep.mubr.f32.mxu0 0.0
    %191 = vmatmul.mubr.f32.gmra.mrb[0].mxu0 %v101
    %v192 = vpop.f32.mrb[0].mxu0
    %v193 = vadd.f32 %v124, %v192
    %v194 = vpop.f32.mrb[0].mxu0
    %195 = vdwg.mxu0
    %v196 = vmax.f32 %v193, 0.0
    %197 = vmatprep.subr.mxu0 0.0
    %198 = vmatpush1.msra.mxu0 %v103
    %199 = vmatprep.subr.mxu0 0.0
    %200 = vmatpush1.msra.mxu0 %v104
    %201 = vmatprep.subr.mxu0 0.0
    %202 = vmatpush1.msra.mxu0 %v105
    %203 = vmatprep.subr.mxu0 0.0
    %204 = vmatpush1.msra.mxu0 %v106
    %205 = vmatprep.subr.mxu0 0.0
    %206 = vmatpush1.msra.mxu0 %v107
    %207 = vmatprep.subr.mxu0 0.0
    %208 = vmatpush1.msra.mxu0 %v108
    %209 = vmatprep.subr.mxu0 0.0
    %210 = vmatpush1.msra.mxu0 %v109
    %211 = vmatprep.subr.mxu0 0.0
    %212 = vmatpush1.msra.mxu0 %v110
    %213 = vmatprep.subr.mxu0 0.0
    %214 = vmatpush1.msra.mxu0 %v111
    %215 = vmatprep.subr.mxu0 0.0
    %216 = vmatpush1.msra.mxu0 %v112
    %217 = vmatprep.subr.mxu0 0.0
    %218 = vmatpush1.msra.mxu0 %v113
    %219 = vmatprep.subr.mxu0 0.0
    %220 = vmatpush1.msra.mxu0 %v114
    %221 = vmatprep.subr.mxu0 0.0
    %222 = vmatpush1.msra.mxu0 %v115
    %223 = vmatprep.subr.mxu0 0.0
    %224 = vmatpush1.msra.mxu0 %v116
    %225 = vmatprep.subr.mxu0 0.0
    %226 = vmatpush1.msra.mxu0 %v117
    %227 = vmatprep.subr.mxu0 0.0
    %228 = vmatpush1.msra.mxu0 %v118
    %229 = vmatprep.subr.mxu0 0.0
    %230 = vmatpush1.msra.mxu0 0.0
    %231 = vmatprep.subr.mxu0 0.0
    %232 = vmatpush1.msra.mxu0 0.0
    %233 = vmatprep.subr.mxu0 0.0
    %234 = vmatpush1.msra.mxu0 0.0
    %235 = vmatprep.subr.mxu0 0.0
    %236 = vmatpush1.msra.mxu0 0.0
    %237 = vmatprep.subr.mxu0 0.0
    %238 = vmatpush1.msra.mxu0 0.0
    %239 = vmatprep.subr.mxu0 0.0
    %240 = vmatpush1.msra.mxu0 0.0
    %241 = vmatprep.subr.mxu0 0.0
    %242 = vmatpush1.msra.mxu0 0.0
    %243 = vmatprep.subr.mxu0 0.0
    %244 = vmatpush1.msra.mxu0 0.0
    %245 = vmatprep.subr.mxu0 0.0
    %246 = vmatpush1.msra.mxu0 0.0
    %247 = vmatprep.subr.mxu0 0.0
    %248 = vmatpush1.msra.mxu0 0.0
    %249 = vmatprep.subr.mxu0 0.0
    %250 = vmatpush1.msra.mxu0 0.0
    %251 = vmatprep.subr.mxu0 0.0
    %252 = vmatpush1.msra.mxu0 0.0
    %253 = vmatprep.subr.mxu0 0.0
    %254 = vmatpush1.msra.mxu0 0.0
    %255 = vmatprep.subr.mxu0 0.0
    %256 = vmatpush1.msra.mxu0 0.0
    %257 = vmatprep.subr.mxu0 0.0
    %258 = vmatpush1.msra.mxu0 0.0
    %259 = vmatprep.subr.mxu0 0.0
    %260 = vmatpush1.msra.mxu0 0.0
    %261 = vmatprep.mubr.f32.mxu0 0.0
    %262 = vmatmul.mubr.f32.gmra.mrb[0].mxu0 %v102
    %v263 = vpop.f32.mrb[0].mxu0
    %v264 = vadd.f32 %v124, %v263
    %v265 = vpop.f32.mrb[0].mxu0
    %266 = vdwg.mxu0
    %v267 = vmax.f32 %v264, 0.0
    %v268 = vld [vmem:[#allocation7] sm:$0xff]
    %v269 = vld [vmem:[#allocation7 + $0x8] sm:$0xff]
    %v270 = vld [vmem:[#allocation7 + $0x10] sm:$0xff]
    %v271 = vld [vmem:[#allocation7 + $0x18] sm:$0xff]
    %v272 = vld [vmem:[#allocation7 + $0x20] sm:$0xff]
    %v273 = vld [vmem:[#allocation7 + $0x28] sm:$0xff]
    %v274 = vld [vmem:[#allocation7 + $0x30] sm:$0xff]
    %v275 = vld [vmem:[#allocation7 + $0x38] sm:$0xff]
    %v276 = vld [vmem:[#allocation7 + $0x40] sm:$0xff]
    %v277 = vld [vmem:[#allocation7 + $0x48] sm:$0xff]
    %v278 = vld [vmem:[#allocation7 + $0x50] sm:$0xff]
    %v279 = vld [vmem:[#allocation7 + $0x58] sm:$0xff]
    %v280 = vld [vmem:[#allocation7 + $0x60] sm:$0xff]
    %v281 = vld [vmem:[#allocation7 + $0x68] sm:$0xff]
    %v282 = vld [vmem:[#allocation7 + $0x70] sm:$0xff]
    %v283 = vld [vmem:[#allocation7 + $0x78] sm:$0xff]
    %v284 = vld [vmem:[%s4] sm:$0x1]
    %v286 = vlaneseq
    %v287 = vshrl.u32 %v286, 7
    %v288 = vsub.s32 0, %v287
    %v289 = vrot.slane %v284, %v288
    %291 = vmatprep.subr.mxu0 0.0
    %292 = vmatpush1.msra.mxu0 %v268
    %293 = vmatprep.subr.mxu0 0.0
    %294 = vmatpush1.msra.mxu0 %v269
    %295 = vmatprep.subr.mxu0 0.0
    %296 = vmatpush1.msra.mxu0 %v270
    %297 = vmatprep.subr.mxu0 0.0
    %298 = vmatpush1.msra.mxu0 %v271
    %299 = vmatprep.subr.mxu0 0.0
    %300 = vmatpush1.msra.mxu0 %v272
    %301 = vmatprep.subr.mxu0 0.0
    %302 = vmatpush1.msra.mxu0 %v273
    %303 = vmatprep.subr.mxu0 0.0
    %304 = vmatpush1.msra.mxu0 %v274
    %305 = vmatprep.subr.mxu0 0.0
    %306 = vmatpush1.msra.mxu0 %v275
    %307 = vmatprep.subr.mxu0 0.0
    %308 = vmatpush1.msra.mxu0 %v276
    %309 = vmatprep.subr.mxu0 0.0
    %310 = vmatpush1.msra.mxu0 %v277
    %311 = vmatprep.subr.mxu0 0.0
    %312 = vmatpush1.msra.mxu0 %v278
    %313 = vmatprep.subr.mxu0 0.0
    %314 = vmatpush1.msra.mxu0 %v279
    %315 = vmatprep.subr.mxu0 0.0
    %316 = vmatpush1.msra.mxu0 %v280
    %317 = vmatprep.subr.mxu0 0.0
    %318 = vmatpush1.msra.mxu0 %v281
    %319 = vmatprep.subr.mxu0 0.0
    %320 = vmatpush1.msra.mxu0 %v282
    %321 = vmatprep.subr.mxu0 0.0
    %322 = vmatpush1.msra.mxu0 %v283
    %323 = vmatprep.subr.mxu0 0.0
    %324 = vmatpush1.msra.mxu0 0.0
    %325 = vmatprep.subr.mxu0 0.0
    %326 = vmatpush1.msra.mxu0 0.0
    %327 = vmatprep.subr.mxu0 0.0
    %328 = vmatpush1.msra.mxu0 0.0
    %329 = vmatprep.subr.mxu0 0.0
    %330 = vmatpush1.msra.mxu0 0.0
    %331 = vmatprep.subr.mxu0 0.0
    %332 = vmatpush1.msra.mxu0 0.0
    %333 = vmatprep.subr.mxu0 0.0
    %334 = vmatpush1.msra.mxu0 0.0
    %335 = vmatprep.subr.mxu0 0.0
    %336 = vmatpush1.msra.mxu0 0.0
    %337 = vmatprep.subr.mxu0 0.0
    %338 = vmatpush1.msra.mxu0 0.0
    %339 = vmatprep.subr.mxu0 0.0
    %340 = vmatpush1.msra.mxu0 0.0
    %341 = vmatprep.subr.mxu0 0.0
    %342 = vmatpush1.msra.mxu0 0.0
    %343 = vmatprep.subr.mxu0 0.0
    %344 = vmatpush1.msra.mxu0 0.0
    %345 = vmatprep.subr.mxu0 0.0
    %346 = vmatpush1.msra.mxu0 0.0
    %347 = vmatprep.subr.mxu0 0.0
    %348 = vmatpush1.msra.mxu0 0.0
    %349 = vmatprep.subr.mxu0 0.0
    %350 = vmatpush1.msra.mxu0 0.0
    %351 = vmatprep.subr.mxu0 0.0
    %352 = vmatpush1.msra.mxu0 0.0
    %353 = vmatprep.subr.mxu0 0.0
    %354 = vmatpush1.msra.mxu0 0.0
    %355 = vmatprep.mubr.f32.mxu0 0.0
    %356 = vmatmul.mubr.f32.gmra.mrb[0].mxu0 %v196
    %v357 = vpop.f32.mrb[0].mxu0
    %v358 = vadd.f32 %v289, %v357
    %v359 = vpop.f32.mrb[0].mxu0
    %360 = vdwg.mxu0
    %v361 = vmax.f32 %v358, 0.0
    %362 = vmatprep.subr.mxu0 0.0
    %363 = vmatpush1.msra.mxu0 %v268
    %364 = vmatprep.subr.mxu0 0.0
    %365 = vmatpush1.msra.mxu0 %v269
    %366 = vmatprep.subr.mxu0 0.0
    %367 = vmatpush1.msra.mxu0 %v270
    %368 = vmatprep.subr.mxu0 0.0
    %369 = vmatpush1.msra.mxu0 %v271
    %370 = vmatprep.subr.mxu0 0.0
    %371 = vmatpush1.msra.mxu0 %v272
    %372 = vmatprep.subr.mxu0 0.0
    %373 = vmatpush1.msra.mxu0 %v273
    %374 = vmatprep.subr.mxu0 0.0
    %375 = vmatpush1.msra.mxu0 %v274
    %376 = vmatprep.subr.mxu0 0.0
    %377 = vmatpush1.msra.mxu0 %v275
    %378 = vmatprep.subr.mxu0 0.0
    %379 = vmatpush1.msra.mxu0 %v276
    %380 = vmatprep.subr.mxu0 0.0
    %381 = vmatpush1.msra.mxu0 %v277
    %382 = vmatprep.subr.mxu0 0.0
    %383 = vmatpush1.msra.mxu0 %v278
    %384 = vmatprep.subr.mxu0 0.0
    %385 = vmatpush1.msra.mxu0 %v279
    %386 = vmatprep.subr.mxu0 0.0
    %387 = vmatpush1.msra.mxu0 %v280
    %388 = vmatprep.subr.mxu0 0.0
    %389 = vmatpush1.msra.mxu0 %v281
    %390 = vmatprep.subr.mxu0 0.0
    %391 = vmatpush1.msra.mxu0 %v282
    %392 = vmatprep.subr.mxu0 0.0
    %393 = vmatpush1.msra.mxu0 %v283
    %394 = vmatprep.subr.mxu0 0.0
    %395 = vmatpush1.msra.mxu0 0.0
    %396 = vmatprep.subr.mxu0 0.0
    %397 = vmatpush1.msra.mxu0 0.0
    %398 = vmatprep.subr.mxu0 0.0
    %399 = vmatpush1.msra.mxu0 0.0
    %400 = vmatprep.subr.mxu0 0.0
    %401 = vmatpush1.msra.mxu0 0.0
    %402 = vmatprep.subr.mxu0 0.0
    %403 = vmatpush1.msra.mxu0 0.0
    %404 = vmatprep.subr.mxu0 0.0
    %405 = vmatpush1.msra.mxu0 0.0
    %406 = vmatprep.subr.mxu0 0.0
    %407 = vmatpush1.msra.mxu0 0.0
    %408 = vmatprep.subr.mxu0 0.0
    %409 = vmatpush1.msra.mxu0 0.0
    %410 = vmatprep.subr.mxu0 0.0
    %411 = vmatpush1.msra.mxu0 0.0
    %412 = vmatprep.subr.mxu0 0.0
    %413 = vmatpush1.msra.mxu0 0.0
    %414 = vmatprep.subr.mxu0 0.0
    %415 = vmatpush1.msra.mxu0 0.0
    %416 = vmatprep.subr.mxu0 0.0
    %417 = vmatpush1.msra.mxu0 0.0
    %418 = vmatprep.subr.mxu0 0.0
    %419 = vmatpush1.msra.mxu0 0.0
    %420 = vmatprep.subr.mxu0 0.0
    %421 = vmatpush1.msra.mxu0 0.0
    %422 = vmatprep.subr.mxu0 0.0
    %423 = vmatpush1.msra.mxu0 0.0
    %424 = vmatprep.subr.mxu0 0.0
    %425 = vmatpush1.msra.mxu0 0.0
    %426 = vmatprep.mubr.f32.mxu0 0.0
    %427 = vmatmul.mubr.f32.gmra.mrb[0].mxu0 %v267
    %v428 = vpop.f32.mrb[0].mxu0
    %v429 = vadd.f32 %v289, %v428
    %v430 = vpop.f32.mrb[0].mxu0
    %431 = vdwg.mxu0
    %v432 = vmax.f32 %v429, 0.0
    %v433 = vld [vmem:[#allocation8] sm:$0xff]
    %v434 = vld [vmem:[#allocation8 + $0x8] sm:$0xff]
    %v435 = vld [vmem:[#allocation8 + $0x10] sm:$0xff]
    %v436 = vld [vmem:[#allocation8 + $0x18] sm:$0xff]
    %v437 = vld [vmem:[#allocation8 + $0x20] sm:$0xff]
    %v438 = vld [vmem:[#allocation8 + $0x28] sm:$0xff]
    %v439 = vld [vmem:[#allocation8 + $0x30] sm:$0xff]
    %v440 = vld [vmem:[#allocation8 + $0x38] sm:$0xff]
    %v441 = vld [vmem:[#allocation8 + $0x40] sm:$0xff]
    %v442 = vld [vmem:[#allocation8 + $0x48] sm:$0xff]
    %v443 = vld [vmem:[#allocation8 + $0x50] sm:$0xff]
    %v444 = vld [vmem:[#allocation8 + $0x58] sm:$0xff]
    %v445 = vld [vmem:[#allocation8 + $0x60] sm:$0xff]
    %v446 = vld [vmem:[#allocation8 + $0x68] sm:$0xff]
    %v447 = vld [vmem:[#allocation8 + $0x70] sm:$0xff]
    %v448 = vld [vmem:[#allocation8 + $0x78] sm:$0xff]
    %v449 = vld [vmem:[%s6] sm:$0x1]
    %v451 = vlaneseq
    %v452 = vshrl.u32 %v451, 7
    %v453 = vsub.s32 0, %v452
    %v454 = vrot.slane %v449, %v453
    %456 = vmatprep.subr.mxu0 0.0
    %457 = vmatpush1.msra.mxu0 %v433
    %458 = vmatprep.subr.mxu0 0.0
    %459 = vmatpush1.msra.mxu0 %v434
    %460 = vmatprep.subr.mxu0 0.0
    %461 = vmatpush1.msra.mxu0 %v435
    %462 = vmatprep.subr.mxu0 0.0
    %463 = vmatpush1.msra.mxu0 %v436
    %464 = vmatprep.subr.mxu0 0.0
    %465 = vmatpush1.msra.mxu0 %v437
    %466 = vmatprep.subr.mxu0 0.0
    %467 = vmatpush1.msra.mxu0 %v438
    %468 = vmatprep.subr.mxu0 0.0
    %469 = vmatpush1.msra.mxu0 %v439
    %470 = vmatprep.subr.mxu0 0.0
    %471 = vmatpush1.msra.mxu0 %v440
    %472 = vmatprep.subr.mxu0 0.0
    %473 = vmatpush1.msra.mxu0 %v441
    %474 = vmatprep.subr.mxu0 0.0
    %475 = vmatpush1.msra.mxu0 %v442
    %476 = vmatprep.subr.mxu0 0.0
    %477 = vmatpush1.msra.mxu0 %v443
    %478 = vmatprep.subr.mxu0 0.0
    %479 = vmatpush1.msra.mxu0 %v444
    %480 = vmatprep.subr.mxu0 0.0
    %481 = vmatpush1.msra.mxu0 %v445
    %482 = vmatprep.subr.mxu0 0.0
    %483 = vmatpush1.msra.mxu0 %v446
    %484 = vmatprep.subr.mxu0 0.0
    %485 = vmatpush1.msra.mxu0 %v447
    %486 = vmatprep.subr.mxu0 0.0
    %487 = vmatpush1.msra.mxu0 %v448
    %488 = vmatprep.subr.mxu0 0.0
    %489 = vmatpush1.msra.mxu0 0.0
    %490 = vmatprep.subr.mxu0 0.0
    %491 = vmatpush1.msra.mxu0 0.0
    %492 = vmatprep.subr.mxu0 0.0
    %493 = vmatpush1.msra.mxu0 0.0
    %494 = vmatprep.subr.mxu0 0.0
    %495 = vmatpush1.msra.mxu0 0.0
    %496 = vmatprep.subr.mxu0 0.0
    %497 = vmatpush1.msra.mxu0 0.0
    %498 = vmatprep.subr.mxu0 0.0
    %499 = vmatpush1.msra.mxu0 0.0
    %500 = vmatprep.subr.mxu0 0.0
    %501 = vmatpush1.msra.mxu0 0.0
    %502 = vmatprep.subr.mxu0 0.0
    %503 = vmatpush1.msra.mxu0 0.0
    %504 = vmatprep.subr.mxu0 0.0
    %505 = vmatpush1.msra.mxu0 0.0
    %506 = vmatprep.subr.mxu0 0.0
    %507 = vmatpush1.msra.mxu0 0.0
    %508 = vmatprep.subr.mxu0 0.0
    %509 = vmatpush1.msra.mxu0 0.0
    %510 = vmatprep.subr.mxu0 0.0
    %511 = vmatpush1.msra.mxu0 0.0
    %512 = vmatprep.subr.mxu0 0.0
    %513 = vmatpush1.msra.mxu0 0.0
    %514 = vmatprep.subr.mxu0 0.0
    %515 = vmatpush1.msra.mxu0 0.0
    %516 = vmatprep.subr.mxu0 0.0
    %517 = vmatpush1.msra.mxu0 0.0
    %518 = vmatprep.subr.mxu0 0.0
    %519 = vmatpush1.msra.mxu0 0.0
    %520 = vmatprep.mubr.f32.mxu0 0.0
    %521 = vmatmul.mubr.f32.gmra.mrb[0].mxu0 %v361
    %v522 = vpop.f32.mrb[0].mxu0
    %v523 = vadd.f32 %v454, %v522
    %v524 = vpop.f32.mrb[0].mxu0
    %525 = vdwg.mxu0
    %v526 = vmax.f32 %v523, 0.0
    %527 = vmatprep.subr.mxu0 0.0
    %528 = vmatpush1.msra.mxu0 %v433
    %529 = vmatprep.subr.mxu0 0.0
    %530 = vmatpush1.msra.mxu0 %v434
    %531 = vmatprep.subr.mxu0 0.0
    %532 = vmatpush1.msra.mxu0 %v435
    %533 = vmatprep.subr.mxu0 0.0
    %534 = vmatpush1.msra.mxu0 %v436
    %535 = vmatprep.subr.mxu0 0.0
    %536 = vmatpush1.msra.mxu0 %v437
    %537 = vmatprep.subr.mxu0 0.0
    %538 = vmatpush1.msra.mxu0 %v438
    %539 = vmatprep.subr.mxu0 0.0
    %540 = vmatpush1.msra.mxu0 %v439
    %541 = vmatprep.subr.mxu0 0.0
    %542 = vmatpush1.msra.mxu0 %v440
    %543 = vmatprep.subr.mxu0 0.0
    %544 = vmatpush1.msra.mxu0 %v441
    %545 = vmatprep.subr.mxu0 0.0
    %546 = vmatpush1.msra.mxu0 %v442
    %547 = vmatprep.subr.mxu0 0.0
    %548 = vmatpush1.msra.mxu0 %v443
    %549 = vmatprep.subr.mxu0 0.0
    %550 = vmatpush1.msra.mxu0 %v444
    %551 = vmatprep.subr.mxu0 0.0
    %552 = vmatpush1.msra.mxu0 %v445
    %553 = vmatprep.subr.mxu0 0.0
    %554 = vmatpush1.msra.mxu0 %v446
    %555 = vmatprep.subr.mxu0 0.0
    %556 = vmatpush1.msra.mxu0 %v447
    %557 = vmatprep.subr.mxu0 0.0
    %558 = vmatpush1.msra.mxu0 %v448
    %559 = vmatprep.subr.mxu0 0.0
    %560 = vmatpush1.msra.mxu0 0.0
    %561 = vmatprep.subr.mxu0 0.0
    %562 = vmatpush1.msra.mxu0 0.0
    %563 = vmatprep.subr.mxu0 0.0
    %564 = vmatpush1.msra.mxu0 0.0
    %565 = vmatprep.subr.mxu0 0.0
    %566 = vmatpush1.msra.mxu0 0.0
    %567 = vmatprep.subr.mxu0 0.0
    %568 = vmatpush1.msra.mxu0 0.0
    %569 = vmatprep.subr.mxu0 0.0
    %570 = vmatpush1.msra.mxu0 0.0
    %571 = vmatprep.subr.mxu0 0.0
    %572 = vmatpush1.msra.mxu0 0.0
    %573 = vmatprep.subr.mxu0 0.0
    %574 = vmatpush1.msra.mxu0 0.0
    %575 = vmatprep.subr.mxu0 0.0
    %576 = vmatpush1.msra.mxu0 0.0
    %577 = vmatprep.subr.mxu0 0.0
    %578 = vmatpush1.msra.mxu0 0.0
    %579 = vmatprep.subr.mxu0 0.0
    %580 = vmatpush1.msra.mxu0 0.0
    %581 = vmatprep.subr.mxu0 0.0
    %582 = vmatpush1.msra.mxu0 0.0
    %583 = vmatprep.subr.mxu0 0.0
    %584 = vmatpush1.msra.mxu0 0.0
    %585 = vmatprep.subr.mxu0 0.0
    %586 = vmatpush1.msra.mxu0 0.0
    %587 = vmatprep.subr.mxu0 0.0
    %588 = vmatpush1.msra.mxu0 0.0
    %589 = vmatprep.subr.mxu0 0.0
    %590 = vmatpush1.msra.mxu0 0.0
    %591 = vmatprep.mubr.f32.mxu0 0.0
    %592 = vmatmul.mubr.f32.gmra.mrb[0].mxu0 %v432
    %v593 = vpop.f32.mrb[0].mxu0
    %v594 = vadd.f32 %v454, %v593
    %v595 = vpop.f32.mrb[0].mxu0
    %596 = vdwg.mxu0
    %v597 = vmax.f32 %v594, 0.0
    %598 = vmatprep.subr.mxu0 0.0
    %599 = vmatpush1.msra.mxu0 %v433
    %600 = vmatprep.subr.mxu0 0.0
    %601 = vmatpush1.msra.mxu0 %v434
    %602 = vmatprep.subr.mxu0 0.0
    %603 = vmatpush1.msra.mxu0 %v435
    %604 = vmatprep.subr.mxu0 0.0
    %605 = vmatpush1.msra.mxu0 %v436
    %606 = vmatprep.subr.mxu0 0.0
    %607 = vmatpush1.msra.mxu0 %v437
    %608 = vmatprep.subr.mxu0 0.0
    %609 = vmatpush1.msra.mxu0 %v438
    %610 = vmatprep.subr.mxu0 0.0
    %611 = vmatpush1.msra.mxu0 %v439
    %612 = vmatprep.subr.mxu0 0.0
    %613 = vmatpush1.msra.mxu0 %v440
    %614 = vmatprep.subr.mxu0 0.0
    %615 = vmatpush1.msra.mxu0 %v441
    %616 = vmatprep.subr.mxu0 0.0
    %617 = vmatpush1.msra.mxu0 %v442
    %618 = vmatprep.subr.mxu0 0.0
    %619 = vmatpush1.msra.mxu0 %v443
    %620 = vmatprep.subr.mxu0 0.0
    %621 = vmatpush1.msra.mxu0 %v444
    %622 = vmatprep.subr.mxu0 0.0
    %623 = vmatpush1.msra.mxu0 %v445
    %624 = vmatprep.subr.mxu0 0.0
    %625 = vmatpush1.msra.mxu0 %v446
    %626 = vmatprep.subr.mxu0 0.0
    %627 = vmatpush1.msra.mxu0 %v447
    %628 = vmatprep.subr.mxu0 0.0
    %629 = vmatpush1.msra.mxu0 %v448
    %630 = vmatprep.subr.mxu0 0.0
    %631 = vmatpush1.msra.mxu0 0.0
    %632 = vmatprep.subr.mxu0 0.0
    %633 = vmatpush1.msra.mxu0 0.0
    %634 = vmatprep.subr.mxu0 0.0
    %635 = vmatpush1.msra.mxu0 0.0
    %636 = vmatprep.subr.mxu0 0.0
    %637 = vmatpush1.msra.mxu0 0.0
    %638 = vmatprep.subr.mxu0 0.0
    %639 = vmatpush1.msra.mxu0 0.0
    %640 = vmatprep.subr.mxu0 0.0
    %641 = vmatpush1.msra.mxu0 0.0
    %642 = vmatprep.subr.mxu0 0.0
    %643 = vmatpush1.msra.mxu0 0.0
    %644 = vmatprep.subr.mxu0 0.0
    %645 = vmatpush1.msra.mxu0 0.0
    %646 = vmatprep.subr.mxu0 0.0
    %647 = vmatpush1.msra.mxu0 0.0
    %648 = vmatprep.subr.mxu0 0.0
    %649 = vmatpush1.msra.mxu0 0.0
    %650 = vmatprep.subr.mxu0 0.0
    %651 = vmatpush1.msra.mxu0 0.0
    %652 = vmatprep.subr.mxu0 0.0
    %653 = vmatpush1.msra.mxu0 0.0
    %654 = vmatprep.subr.mxu0 0.0
    %655 = vmatpush1.msra.mxu0 0.0
    %656 = vmatprep.subr.mxu0 0.0
    %657 = vmatpush1.msra.mxu0 0.0
    %658 = vmatprep.subr.mxu0 0.0
    %659 = vmatpush1.msra.mxu0 0.0
    %660 = vmatprep.subr.mxu0 0.0
    %661 = vmatpush1.msra.mxu0 0.0
    %662 = vmatprep.mubr.f32.mxu0 0.0
    %663 = vmatmul.mubr.f32.gmra.mrb[0].mxu0 %v526
    %v664 = vpop.f32.mrb[0].mxu0
    %v665 = vadd.f32 %v454, %v664
    %v666 = vpop.f32.mrb[0].mxu0
    %667 = vdwg.mxu0
    %v668 = vmax.f32 %v665, 0.0
    %669 = vmatprep.subr.mxu0 0.0
    %670 = vmatpush1.msra.mxu0 %v433
    %671 = vmatprep.subr.mxu0 0.0
    %672 = vmatpush1.msra.mxu0 %v434
    %673 = vmatprep.subr.mxu0 0.0
    %674 = vmatpush1.msra.mxu0 %v435
    %675 = vmatprep.subr.mxu0 0.0
    %676 = vmatpush1.msra.mxu0 %v436
    %677 = vmatprep.subr.mxu0 0.0
    %678 = vmatpush1.msra.mxu0 %v437
    %679 = vmatprep.subr.mxu0 0.0
    %680 = vmatpush1.msra.mxu0 %v438
    %681 = vmatprep.subr.mxu0 0.0
    %682 = vmatpush1.msra.mxu0 %v439
    %683 = vmatprep.subr.mxu0 0.0
    %684 = vmatpush1.msra.mxu0 %v440
    %685 = vmatprep.subr.mxu0 0.0
    %686 = vmatpush1.msra.mxu0 %v441
    %687 = vmatprep.subr.mxu0 0.0
    %688 = vmatpush1.msra.mxu0 %v442
    %689 = vmatprep.subr.mxu0 0.0
    %690 = vmatpush1.msra.mxu0 %v443
    %691 = vmatprep.subr.mxu0 0.0
    %692 = vmatpush1.msra.mxu0 %v444
    %693 = vmatprep.subr.mxu0 0.0
    %694 = vmatpush1.msra.mxu0 %v445
    %695 = vmatprep.subr.mxu0 0.0
    %696 = vmatpush1.msra.mxu0 %v446
    %697 = vmatprep.subr.mxu0 0.0
    %698 = vmatpush1.msra.mxu0 %v447
    %699 = vmatprep.subr.mxu0 0.0
    %700 = vmatpush1.msra.mxu0 %v448
    %701 = vmatprep.subr.mxu0 0.0
    %702 = vmatpush1.msra.mxu0 0.0
    %703 = vmatprep.subr.mxu0 0.0
    %704 = vmatpush1.msra.mxu0 0.0
    %705 = vmatprep.subr.mxu0 0.0
    %706 = vmatpush1.msra.mxu0 0.0
    %707 = vmatprep.subr.mxu0 0.0
    %708 = vmatpush1.msra.mxu0 0.0
    %709 = vmatprep.subr.mxu0 0.0
    %710 = vmatpush1.msra.mxu0 0.0
    %711 = vmatprep.subr.mxu0 0.0
    %712 = vmatpush1.msra.mxu0 0.0
    %713 = vmatprep.subr.mxu0 0.0
    %714 = vmatpush1.msra.mxu0 0.0
    %715 = vmatprep.subr.mxu0 0.0
    %716 = vmatpush1.msra.mxu0 0.0
    %717 = vmatprep.subr.mxu0 0.0
    %718 = vmatpush1.msra.mxu0 0.0
    %719 = vmatprep.subr.mxu0 0.0
    %720 = vmatpush1.msra.mxu0 0.0
    %721 = vmatprep.subr.mxu0 0.0
    %722 = vmatpush1.msra.mxu0 0.0
    %723 = vmatprep.subr.mxu0 0.0
    %724 = vmatpush1.msra.mxu0 0.0
    %725 = vmatprep.subr.mxu0 0.0
    %726 = vmatpush1.msra.mxu0 0.0
    %727 = vmatprep.subr.mxu0 0.0
    %728 = vmatpush1.msra.mxu0 0.0
    %729 = vmatprep.subr.mxu0 0.0
    %730 = vmatpush1.msra.mxu0 0.0
    %731 = vmatprep.subr.mxu0 0.0
    %732 = vmatpush1.msra.mxu0 0.0
    %733 = vmatprep.mubr.f32.mxu0 0.0
    %734 = vmatmul.mubr.f32.gmra.mrb[0].mxu0 %v597
    %v735 = vpop.f32.mrb[0].mxu0
    %v736 = vadd.f32 %v454, %v735
    %v737 = vpop.f32.mrb[0].mxu0
    %738 = vdwg.mxu0
    %v739 = vmax.f32 %v736, 0.0
    %740 = vmatprep.subr.mxu0 0.0
    %741 = vmatpush1.msra.mxu0 %v433
    %742 = vmatprep.subr.mxu0 0.0
    %743 = vmatpush1.msra.mxu0 %v434
    %744 = vmatprep.subr.mxu0 0.0
    %745 = vmatpush1.msra.mxu0 %v435
    %746 = vmatprep.subr.mxu0 0.0
    %747 = vmatpush1.msra.mxu0 %v436
    %748 = vmatprep.subr.mxu0 0.0
    %749 = vmatpush1.msra.mxu0 %v437
    %750 = vmatprep.subr.mxu0 0.0
    %751 = vmatpush1.msra.mxu0 %v438
    %752 = vmatprep.subr.mxu0 0.0
    %753 = vmatpush1.msra.mxu0 %v439
    %754 = vmatprep.subr.mxu0 0.0
    %755 = vmatpush1.msra.mxu0 %v440
    %756 = vmatprep.subr.mxu0 0.0
    %757 = vmatpush1.msra.mxu0 %v441
    %758 = vmatprep.subr.mxu0 0.0
    %759 = vmatpush1.msra.mxu0 %v442
    %760 = vmatprep.subr.mxu0 0.0
    %761 = vmatpush1.msra.mxu0 %v443
    %762 = vmatprep.subr.mxu0 0.0
    %763 = vmatpush1.msra.mxu0 %v444
    %764 = vmatprep.subr.mxu0 0.0
    %765 = vmatpush1.msra.mxu0 %v445
    %766 = vmatprep.subr.mxu0 0.0
    %767 = vmatpush1.msra.mxu0 %v446
    %768 = vmatprep.subr.mxu0 0.0
    %769 = vmatpush1.msra.mxu0 %v447
    %770 = vmatprep.subr.mxu0 0.0
    %771 = vmatpush1.msra.mxu0 %v448
    %772 = vmatprep.subr.mxu0 0.0
    %773 = vmatpush1.msra.mxu0 0.0
    %774 = vmatprep.subr.mxu0 0.0
    %775 = vmatpush1.msra.mxu0 0.0
    %776 = vmatprep.subr.mxu0 0.0
    %777 = vmatpush1.msra.mxu0 0.0
    %778 = vmatprep.subr.mxu0 0.0
    %779 = vmatpush1.msra.mxu0 0.0
    %780 = vmatprep.subr.mxu0 0.0
    %781 = vmatpush1.msra.mxu0 0.0
    %782 = vmatprep.subr.mxu0 0.0
    %783 = vmatpush1.msra.mxu0 0.0
    %784 = vmatprep.subr.mxu0 0.0
    %785 = vmatpush1.msra.mxu0 0.0
    %786 = vmatprep.subr.mxu0 0.0
    %787 = vmatpush1.msra.mxu0 0.0
    %788 = vmatprep.subr.mxu0 0.0
    %789 = vmatpush1.msra.mxu0 0.0
    %790 = vmatprep.subr.mxu0 0.0
    %791 = vmatpush1.msra.mxu0 0.0
    %792 = vmatprep.subr.mxu0 0.0
    %793 = vmatpush1.msra.mxu0 0.0
    %794 = vmatprep.subr.mxu0 0.0
    %795 = vmatpush1.msra.mxu0 0.0
    %796 = vmatprep.subr.mxu0 0.0
    %797 = vmatpush1.msra.mxu0 0.0
    %798 = vmatprep.subr.mxu0 0.0
    %799 = vmatpush1.msra.mxu0 0.0
    %800 = vmatprep.subr.mxu0 0.0
    %801 = vmatpush1.msra.mxu0 0.0
    %802 = vmatprep.subr.mxu0 0.0
    %803 = vmatpush1.msra.mxu0 0.0
    %804 = vmatprep.mubr.f32.mxu0 0.0
    %805 = vmatmul.mubr.f32.gmra.mrb[0].mxu0 %v668
    %v806 = vpop.f32.mrb[0].mxu0
    %v807 = vadd.f32 %v454, %v806
    %v808 = vpop.f32.mrb[0].mxu0
    %809 = vdwg.mxu0
    %v810 = vmax.f32 %v807, 0.0
    %811 = vmatprep.subr.mxu0 0.0
    %812 = vmatpush1.msra.mxu0 %v433
    %813 = vmatprep.subr.mxu0 0.0
    %814 = vmatpush1.msra.mxu0 %v434
    %815 = vmatprep.subr.mxu0 0.0
    %816 = vmatpush1.msra.mxu0 %v435
    %817 = vmatprep.subr.mxu0 0.0
    %818 = vmatpush1.msra.mxu0 %v436
    %819 = vmatprep.subr.mxu0 0.0
    %820 = vmatpush1.msra.mxu0 %v437
    %821 = vmatprep.subr.mxu0 0.0
    %822 = vmatpush1.msra.mxu0 %v438
    %823 = vmatprep.subr.mxu0 0.0
    %824 = vmatpush1.msra.mxu0 %v439
    %825 = vmatprep.subr.mxu0 0.0
    %826 = vmatpush1.msra.mxu0 %v440
    %827 = vmatprep.subr.mxu0 0.0
    %828 = vmatpush1.msra.mxu0 %v441
    %829 = vmatprep.subr.mxu0 0.0
    %830 = vmatpush1.msra.mxu0 %v442
    %831 = vmatprep.subr.mxu0 0.0
    %832 = vmatpush1.msra.mxu0 %v443
    %833 = vmatprep.subr.mxu0 0.0
    %834 = vmatpush1.msra.mxu0 %v444
    %835 = vmatprep.subr.mxu0 0.0
    %836 = vmatpush1.msra.mxu0 %v445
    %837 = vmatprep.subr.mxu0 0.0
    %838 = vmatpush1.msra.mxu0 %v446
    %839 = vmatprep.subr.mxu0 0.0
    %840 = vmatpush1.msra.mxu0 %v447
    %841 = vmatprep.subr.mxu0 0.0
    %842 = vmatpush1.msra.mxu0 %v448
    %843 = vmatprep.subr.mxu0 0.0
    %844 = vmatpush1.msra.mxu0 0.0
    %845 = vmatprep.subr.mxu0 0.0
    %846 = vmatpush1.msra.mxu0 0.0
    %847 = vmatprep.subr.mxu0 0.0
    %848 = vmatpush1.msra.mxu0 0.0
    %849 = vmatprep.subr.mxu0 0.0
    %850 = vmatpush1.msra.mxu0 0.0
    %851 = vmatprep.subr.mxu0 0.0
    %852 = vmatpush1.msra.mxu0 0.0
    %853 = vmatprep.subr.mxu0 0.0
    %854 = vmatpush1.msra.mxu0 0.0
    %855 = vmatprep.subr.mxu0 0.0
    %856 = vmatpush1.msra.mxu0 0.0
    %857 = vmatprep.subr.mxu0 0.0
    %858 = vmatpush1.msra.mxu0 0.0
    %859 = vmatprep.subr.mxu0 0.0
    %860 = vmatpush1.msra.mxu0 0.0
    %861 = vmatprep.subr.mxu0 0.0
    %862 = vmatpush1.msra.mxu0 0.0
    %863 = vmatprep.subr.mxu0 0.0
    %864 = vmatpush1.msra.mxu0 0.0
    %865 = vmatprep.subr.mxu0 0.0
    %866 = vmatpush1.msra.mxu0 0.0
    %867 = vmatprep.subr.mxu0 0.0
    %868 = vmatpush1.msra.mxu0 0.0
    %869 = vmatprep.subr.mxu0 0.0
    %870 = vmatpush1.msra.mxu0 0.0
    %871 = vmatprep.subr.mxu0 0.0
    %872 = vmatpush1.msra.mxu0 0.0
    %873 = vmatprep.subr.mxu0 0.0
    %874 = vmatpush1.msra.mxu0 0.0
    %875 = vmatprep.mubr.f32.mxu0 0.0
    %876 = vmatmul.mubr.f32.gmra.mrb[0].mxu0 %v739
    %v877 = vpop.f32.mrb[0].mxu0
    %v878 = vadd.f32 %v454, %v877
    %v879 = vpop.f32.mrb[0].mxu0
    %880 = vdwg.mxu0
    %v881 = vmax.f32 %v878, 0.0
    %v882 = vld [vmem:[#allocation10] sm:$0xff]
    %v883 = vld [vmem:[#allocation10 + $0x8] sm:$0xff]
    %v884 = vld [vmem:[#allocation10 + $0x10] sm:$0xff]
    %v885 = vld [vmem:[#allocation10 + $0x18] sm:$0xff]
    %v886 = vld [vmem:[#allocation10 + $0x20] sm:$0xff]
    %v887 = vld [vmem:[#allocation10 + $0x28] sm:$0xff]
    %v888 = vld [vmem:[#allocation10 + $0x30] sm:$0xff]
    %v889 = vld [vmem:[#allocation10 + $0x38] sm:$0xff]
    %v890 = vld [vmem:[#allocation10 + $0x40] sm:$0xff]
    %v891 = vld [vmem:[#allocation10 + $0x48] sm:$0xff]
    %v892 = vld [vmem:[#allocation10 + $0x50] sm:$0xff]
    %v893 = vld [vmem:[#allocation10 + $0x58] sm:$0xff]
    %v894 = vld [vmem:[#allocation10 + $0x60] sm:$0xff]
    %v895 = vld [vmem:[#allocation10 + $0x68] sm:$0xff]
    %v896 = vld [vmem:[#allocation10 + $0x70] sm:$0xff]
    %v897 = vld [vmem:[#allocation10 + $0x78] sm:$0xff]
    %v898 = vld [vmem:[%s8] sm:$0x1]
    %v900 = vlaneseq
    %v901 = vshrl.u32 %v900, 7
    %v902 = vsub.s32 0, %v901
    %v903 = vrot.slane %v898, %v902
    %905 = vmatprep.subr.mxu0 0.0
    %906 = vmatpush1.msra.mxu0 %v882
    %907 = vmatprep.subr.mxu0 0.0
    %908 = vmatpush1.msra.mxu0 %v883
    %909 = vmatprep.subr.mxu0 0.0
    %910 = vmatpush1.msra.mxu0 %v884
    %911 = vmatprep.subr.mxu0 0.0
    %912 = vmatpush1.msra.mxu0 %v885
    %913 = vmatprep.subr.mxu0 0.0
    %914 = vmatpush1.msra.mxu0 %v886
    %915 = vmatprep.subr.mxu0 0.0
    %916 = vmatpush1.msra.mxu0 %v887
    %917 = vmatprep.subr.mxu0 0.0
    %918 = vmatpush1.msra.mxu0 %v888
    %919 = vmatprep.subr.mxu0 0.0
    %920 = vmatpush1.msra.mxu0 %v889
    %921 = vmatprep.subr.mxu0 0.0
    %922 = vmatpush1.msra.mxu0 %v890
    %923 = vmatprep.subr.mxu0 0.0
    %924 = vmatpush1.msra.mxu0 %v891
    %925 = vmatprep.subr.mxu0 0.0
    %926 = vmatpush1.msra.mxu0 %v892
    %927 = vmatprep.subr.mxu0 0.0
    %928 = vmatpush1.msra.mxu0 %v893
    %929 = vmatprep.subr.mxu0 0.0
    %930 = vmatpush1.msra.mxu0 %v894
    %931 = vmatprep.subr.mxu0 0.0
    %932 = vmatpush1.msra.mxu0 %v895
    %933 = vmatprep.subr.mxu0 0.0
    %934 = vmatpush1.msra.mxu0 %v896
    %935 = vmatprep.subr.mxu0 0.0
    %936 = vmatpush1.msra.mxu0 %v897
    %937 = vmatprep.subr.mxu0 0.0
    %938 = vmatpush1.msra.mxu0 0.0
    %939 = vmatprep.subr.mxu0 0.0
    %940 = vmatpush1.msra.mxu0 0.0
    %941 = vmatprep.subr.mxu0 0.0
    %942 = vmatpush1.msra.mxu0 0.0
    %943 = vmatprep.subr.mxu0 0.0
    %944 = vmatpush1.msra.mxu0 0.0
    %945 = vmatprep.subr.mxu0 0.0
    %946 = vmatpush1.msra.mxu0 0.0
    %947 = vmatprep.subr.mxu0 0.0
    %948 = vmatpush1.msra.mxu0 0.0
    %949 = vmatprep.subr.mxu0 0.0
    %950 = vmatpush1.msra.mxu0 0.0
    %951 = vmatprep.subr.mxu0 0.0
    %952 = vmatpush1.msra.mxu0 0.0
    %953 = vmatprep.subr.mxu0 0.0
    %954 = vmatpush1.msra.mxu0 0.0
    %955 = vmatprep.subr.mxu0 0.0
    %956 = vmatpush1.msra.mxu0 0.0
    %957 = vmatprep.subr.mxu0 0.0
    %958 = vmatpush1.msra.mxu0 0.0
    %959 = vmatprep.subr.mxu0 0.0
    %960 = vmatpush1.msra.mxu0 0.0
    %961 = vmatprep.subr.mxu0 0.0
    %962 = vmatpush1.msra.mxu0 0.0
    %963 = vmatprep.subr.mxu0 0.0
    %964 = vmatpush1.msra.mxu0 0.0
    %965 = vmatprep.subr.mxu0 0.0
    %966 = vmatpush1.msra.mxu0 0.0
    %967 = vmatprep.subr.mxu0 0.0
    %968 = vmatpush1.msra.mxu0 0.0
    %969 = vmatprep.mubr.f32.mxu0 0.0
    %970 = vmatmul.mubr.f32.gmra.mrb[0].mxu0 %v810
    %v971 = vpop.f32.mrb[0].mxu0
    %v972 = vadd.f32 %v903, %v971
    %v973 = vpop.f32.mrb[0].mxu0
    %974 = vdwg.mxu0
    %975 = vst [vmem:[#allocation11] sm:$0xff] %v972
    %976 = vmatprep.subr.mxu0 0.0
    %977 = vmatpush1.msra.mxu0 %v882
    %978 = vmatprep.subr.mxu0 0.0
    %979 = vmatpush1.msra.mxu0 %v883
    %980 = vmatprep.subr.mxu0 0.0
    %981 = vmatpush1.msra.mxu0 %v884
    %982 = vmatprep.subr.mxu0 0.0
    %983 = vmatpush1.msra.mxu0 %v885
    %984 = vmatprep.subr.mxu0 0.0
    %985 = vmatpush1.msra.mxu0 %v886
    %986 = vmatprep.subr.mxu0 0.0
    %987 = vmatpush1.msra.mxu0 %v887
    %988 = vmatprep.subr.mxu0 0.0
    %989 = vmatpush1.msra.mxu0 %v888
    %990 = vmatprep.subr.mxu0 0.0
    %991 = vmatpush1.msra.mxu0 %v889
    %992 = vmatprep.subr.mxu0 0.0
    %993 = vmatpush1.msra.mxu0 %v890
    %994 = vmatprep.subr.mxu0 0.0
    %995 = vmatpush1.msra.mxu0 %v891
    %996 = vmatprep.subr.mxu0 0.0
    %997 = vmatpush1.msra.mxu0 %v892
    %998 = vmatprep.subr.mxu0 0.0
    %999 = vmatpush1.msra.mxu0 %v893
    %1000 = vmatprep.subr.mxu0 0.0
    %1001 = vmatpush1.msra.mxu0 %v894
    %1002 = vmatprep.subr.mxu0 0.0
    %1003 = vmatpush1.msra.mxu0 %v895
    %1004 = vmatprep.subr.mxu0 0.0
    %1005 = vmatpush1.msra.mxu0 %v896
    %1006 = vmatprep.subr.mxu0 0.0
    %1007 = vmatpush1.msra.mxu0 %v897
    %1008 = vmatprep.subr.mxu0 0.0
    %1009 = vmatpush1.msra.mxu0 0.0
    %1010 = vmatprep.subr.mxu0 0.0
    %1011 = vmatpush1.msra.mxu0 0.0
    %1012 = vmatprep.subr.mxu0 0.0
    %1013 = vmatpush1.msra.mxu0 0.0
    %1014 = vmatprep.subr.mxu0 0.0
    %1015 = vmatpush1.msra.mxu0 0.0
    %1016 = vmatprep.subr.mxu0 0.0
    %1017 = vmatpush1.msra.mxu0 0.0
    %1018 = vmatprep.subr.mxu0 0.0
    %1019 = vmatpush1.msra.mxu0 0.0
    %1020 = vmatprep.subr.mxu0 0.0
    %1021 = vmatpush1.msra.mxu0 0.0
    %1022 = vmatprep.subr.mxu0 0.0
    %1023 = vmatpush1.msra.mxu0 0.0
    %1024 = vmatprep.subr.mxu0 0.0
    %1025 = vmatpush1.msra.mxu0 0.0
    %1026 = vmatprep.subr.mxu0 0.0
    %1027 = vmatpush1.msra.mxu0 0.0
    %1028 = vmatprep.subr.mxu0 0.0
    %1029 = vmatpush1.msra.mxu0 0.0
    %1030 = vmatprep.subr.mxu0 0.0
    %1031 = vmatpush1.msra.mxu0 0.0
    %1032 = vmatprep.subr.mxu0 0.0
    %1033 = vmatpush1.msra.mxu0 0.0
    %1034 = vmatprep.subr.mxu0 0.0
    %1035 = vmatpush1.msra.mxu0 0.0
    %1036 = vmatprep.subr.mxu0 0.0
    %1037 = vmatpush1.msra.mxu0 0.0
    %1038 = vmatprep.subr.mxu0 0.0
    %1039 = vmatpush1.msra.mxu0 0.0
    %1040 = vmatprep.mubr.f32.mxu0 0.0
    %1041 = vmatmul.mubr.f32.gmra.mrb[0].mxu0 %v881
    %v1042 = vpop.f32.mrb[0].mxu0
    %v1043 = vadd.f32 %v903, %v1042
    %v1044 = vpop.f32.mrb[0].mxu0
    %1045 = vdwg.mxu0
    %1046 = vst [vmem:[#allocation11 + $0x8] sm:$0xff] %v1043
    // Predicated region
    $region58: #{tpu_custom_call.1} parent=1 // pred_check
      _
    $region59: #{tpu_custom_call.1} parent=1 // pred_check_branch
      %1048 = sbr.rel (0) target = $region61
    $region60: #{tpu_custom_call.1} parent=1 // pred_region
      %s1050 = ssub.s32 256, 256
      %1051 = vsyncadd [#allocation4], %s1050
      %s1052 = sshll.u32 [#allocation11], 4
      %s1053 = int_to_ptr.vmem [resolvable:$true] %s1052
      %1058 = dma.vmem_to_hbm [thread:$0]  %s1053, 256, %s9, [#allocation4], 128, 128, 8
    $region61: #{tpu_custom_call.1} parent=1 // pred_fallthru
      _
    // Predicated region
    $region62: #{tpu_custom_call.1} parent=1 // pred_check
      _
    $region63: #{tpu_custom_call.1} parent=1 // pred_check_branch
      %1060 = sbr.rel (0) target = $region65
    $region64: #{tpu_custom_call.1} parent=1 // pred_region
      %1061 = dma.done [#allocation4], 256
    $region65: #{tpu_custom_call.1} parent=1 // pred_fallthru
      _
    %1062 = vsyncpa [#allocation3], 1
    %1063 = vsyncpa [#allocation6], 1
    %1064 = vsyncpa [#allocation9], 1
    %1065 = vsyncpa [#allocation4], 1

</llo_original>
